<compile_context>
chip_gen: v5e
topology: v5e:2x2
jax: 0.10.0
libtpu: 0.0.40
codegen_flags: <defaults>
</compile_context>

<pallas_src>
import functools

import jax
import jax.numpy as jnp
from jax.experimental import pallas as pl
from jax.experimental.pallas import tpu as pltpu


def _round_up(x, m):
    return ((x + m - 1) // m) * m


def _tpu_vmem_and_is_v7x():
    """Best-effort trace-time chip query (never raises)."""
    vmem_cap = 128 << 20
    is_v7x = False
    try:
        vmem_cap = int(pltpu.get_tpu_info().vmem_capacity_bytes)
    except Exception:
        pass
    try:
        kind = jax.devices()[0].device_kind.lower()
        is_v7x = ("v7" in kind) or ("7x" in kind)
    except Exception:
        pass
    if vmem_cap <= (65 << 20):          # 64 MiB / TensorCore => v7x-class part
        is_v7x = True
    return vmem_cap, is_v7x


# ----------------------------- kernel bodies --------------------------------

def _laaf_kernel_fused(x_ref, w_ref, b_ref, o_ref, *, scale):
    """Single-K-step path (resident weight, or full-K tile): fully fused."""
    # x_ref: (tm, K)  w_ref: (K, tn)  b_ref: (1, tn)  o_ref: (tm, tn)
    y = jnp.dot(x_ref[...], w_ref[...], preferred_element_type=jnp.float32)
    y = y + b_ref[...].astype(jnp.float32)
    # TODO(synk): on v7x, if the EUP (tanh) becomes the binding slot and the
    # output is bf16, consider a bf16 tanh path.
    o_ref[...] = jnp.tanh(scale * y).astype(o_ref.dtype)


def _laaf_kernel_ktiled_f32out(x_ref, w_ref, b_ref, o_ref, *, scale):
    """K tiled on grid axis 2, f32 output: accumulate directly into o_ref."""
    k = pl.program_id(2)
    partial = jnp.dot(x_ref[...], w_ref[...], preferred_element_type=jnp.float32)

    @pl.when(k == 0)
    def _():
        o_ref[...] = partial

    @pl.when(k > 0)
    def _():
        o_ref[...] += partial

    @pl.when(k == pl.num_programs(2) - 1)
    def _():
        y = o_ref[...] + b_ref[...].astype(jnp.float32)
        o_ref[...] = jnp.tanh(scale * y)


def _laaf_kernel_ktiled_acc(x_ref, w_ref, b_ref, o_ref, acc_ref, *, scale):
    """K tiled on grid axis 2, narrow output dtype: f32 accumulator scratch."""
    k = pl.program_id(2)
    partial = jnp.dot(x_ref[...], w_ref[...], preferred_element_type=jnp.float32)

    @pl.when(k == 0)
    def _():
        acc_ref[...] = partial

    @pl.when(k > 0)
    def _():
        acc_ref[...] += partial

    @pl.when(k == pl.num_programs(2) - 1)
    def _():
        y = acc_ref[...] + b_ref[...].astype(jnp.float32)
        o_ref[...] = jnp.tanh(scale * y).astype(o_ref.dtype)


# ------------------------------- wrapper -------------------------------------

def laaf_layer(x, weight_t, bias, n, a, *, tm=None, tn=None, tk=None,
               out_dtype=None, force_generic=False):
    """LAAF forward: tanh(n * a * (x @ weight_t + bias)).

    x:        (M, K)   f32 or bf16
    weight_t: (K, N)   f32 or bf16 (= W^T of the nn.Linear weight)
    bias:     (N,)     f32
    n, a:     Python scalars (baked into the kernel as a constant).
    """
    M, K = x.shape
    Kw, N = weight_t.shape
    assert K == Kw, "weight_t must be (dim_in, dim_out)"
    assert bias.shape == (N,)
    if out_dtype is None:
        out_dtype = x.dtype

    # n and a are plain Python scalars -> fold into a trace-time constant.
    # TODO(synk): if `a` becomes a trainable runtime tensor, pass it as a
    # (1, 1) SMEM input (scalar prefetch) and add a custom_vjp for gradients.
    scale = float(n) * float(a)

    xb = jnp.dtype(x.dtype).itemsize
    wb = jnp.dtype(weight_t.dtype).itemsize
    ob = jnp.dtype(out_dtype).itemsize

    vmem_cap, is_v7x = _tpu_vmem_and_is_v7x()
    vmem_ceiling = (56 << 20) if is_v7x else (100 << 20)
    vmem_ceiling = min(vmem_ceiling, max(vmem_cap - (8 << 20), 16 << 20))

    bias2d = bias.reshape(1, N)

    # ---- default tile sizes -------------------------------------------------
    if tm is None:
        tm = 256
    if tn is None:
        tn = 1024 if N >= 1024 else 512
    if tk is None:
        tk = 2048 if xb <= 2 else 1024
    tm = max(8, min(_round_up(tm, 8), _round_up(M, 8)))     # sublane-aligned

    # ---- resident-weight fast path ------------------------------------------
    # Weight + bias stay in VMEM with a constant block index (one HBM fetch);
    # x / out stream exactly once over a 1-D batch grid.
    def _resident_bytes(tm_):
        return (2 * tm_ * K * xb            # double-buffered x tile
                + K * N * wb + N * 4        # weight + bias (constant block idx)
                + 2 * tm_ * N * ob)         # double-buffered out tile

    resident = False
    weight_small = (K * N * wb + N * 4) <= (16 << 20)
    if weight_small and not force_generic:
        tm_res = tm
        while tm_res > 8 and _resident_bytes(tm_res) > int(0.7 * vmem_ceiling):
            tm_res = max(8, _round_up(tm_res // 2, 8))
        if _resident_bytes(tm_res) <= int(0.7 * vmem_ceiling):
            resident = True
            tm = tm_res

    if resident:
        gm = pl.cdiv(M, tm)
        # v7x megacore only: make sure the parallel batch axis has >= 2 steps.
        if is_v7x and gm < 2 and M > 8:
            tm = max(8, _round_up(pl.cdiv(M, 2), 8))
            gm = pl.cdiv(M, tm)

        kernel = functools.partial(_laaf_kernel_fused, scale=scale)
        grid_spec = pltpu.PrefetchScalarGridSpec(
            num_scalar_prefetch=0,
            grid=(gm,),
            in_specs=[
                pl.BlockSpec((tm, K), lambda i: (i, 0)),     # x tile (streamed)
                pl.BlockSpec((K, N), lambda i: (0, 0)),      # whole weight (resident)
                pl.BlockSpec((1, N), lambda i: (0, 0)),      # bias (resident)
            ],
            out_specs=pl.BlockSpec((tm, N), lambda i: (i, 0)),
        )
        dim_sem = ("parallel",)
        vmem_est = _resident_bytes(tm)
        args = (x, weight_t, bias2d)
    else:
        # ---- generic streaming path (large weight): 3-D grid ----------------
        tn = max(128, min(_round_up(tn, 128), _round_up(N, 128)))
        if K <= tk:
            tk = K                              # full-K block == array dim
        else:
            # Prefer a 128-multiple tk that divides K (avoids a zero-pad copy).
            tk_req = _round_up(tk, 128)
            tk_div = 0
            for cand in range(tk_req, 127, -128):
                if K % cand == 0:
                    tk_div = cand
                    break
            tk = tk_div if tk_div else tk_req

        x_in, w_in = x, weight_t
        gk = pl.cdiv(K, tk)
        if gk > 1 and K % tk != 0:
            # Zero-pad K only: garbage in a ragged K block would corrupt real
            # outputs, unlike ragged M/N blocks whose garbage is discarded.
            K_pad = _round_up(K, tk)
            x_in = jnp.pad(x, ((0, 0), (0, K_pad - K)))
            w_in = jnp.pad(weight_t, ((0, K_pad - K), (0, 0)))
            gk = K_pad // tk

        gm = pl.cdiv(M, tm)
        gn = pl.cdiv(N, tn)
        # v7x megacore only; skip if another parallel axis already has >=2 steps.
        if is_v7x and gm < 2 and gn < 2 and M > 8:
            tm = max(8, _round_up(pl.cdiv(M, 2), 8))
            gm = pl.cdiv(M, tm)

        if gk == 1:
            kernel = functools.partial(_laaf_kernel_fused, scale=scale)
            scratch_shapes = []
        elif jnp.dtype(out_dtype) == jnp.dtype(jnp.float32):
            kernel = functools.partial(_laaf_kernel_ktiled_f32out, scale=scale)
            scratch_shapes = []                 # accumulate in the output block
        else:
            kernel = functools.partial(_laaf_kernel_ktiled_acc, scale=scale)
            scratch_shapes = [pltpu.VMEM((tm, tn), jnp.float32)]

        # TODO(synk): on v5e, if xprof shows exposed DMA, add
        # pipeline_mode=pl.Buffered(3) on the x / weight BlockSpecs.
        grid_spec = pltpu.PrefetchScalarGridSpec(
            num_scalar_prefetch=0,
            grid=(gm, gn, gk),
            in_specs=[
                pl.BlockSpec((tm, tk), lambda i, j, k: (i, k)),   # x tile
                pl.BlockSpec((tk, tn), lambda i, j, k: (k, j)),   # weight tile
                pl.BlockSpec((1, tn), lambda i, j, k: (0, j)),    # bias tile
            ],
            out_specs=pl.BlockSpec((tm, tn), lambda i, j, k: (i, j)),
            scratch_shapes=scratch_shapes,
        )
        dim_sem = ("parallel", "parallel", "arbitrary")
        vmem_est = (2 * (tm * tk * xb + tk * tn * wb + tn * 4 + tm * tn * ob)
                    + tm * tn * 4)
        args = (x_in, w_in, bias2d)

    vmem_limit = int(min(max(int(vmem_est * 1.25) + (2 << 20), 16 << 20),
                         vmem_ceiling))

    # Output shape is exactly (M, N): ragged edge blocks are masked by Pallas,
    # so there is no pad/slice copy on the batch or output dimensions.
    out = pl.pallas_call(
        kernel,
        out_shape=jax.ShapeDtypeStruct((M, N), out_dtype),
        grid_spec=grid_spec,
        compiler_params=pltpu.CompilerParams(
            dimension_semantics=dim_sem,
            vmem_limit_bytes=vmem_limit,
        ),
    )(*args)
    return out


def laaf_reference(x, weight_t, bias, n, a):
    return jnp.tanh(n * a * (x.astype(jnp.float32) @ weight_t.astype(jnp.float32)
                             + bias))


if __name__ == "__main__":
    key = jax.random.PRNGKey(0)
    kx, kw, kb, kx2, kw2, kb2 = jax.random.split(key, 6)

    n_scalar, a_scalar = 2.0, 0.5

    # ---- Case 1/2: typical LAAF dims -> resident-weight fast path -----------
    # batch=130 (ragged, not a multiple of 8), dim_in=64, dim_out=128.
    M, dim_in, dim_out = 130, 64, 128
    x = jax.random.normal(kx, (M, dim_in), dtype=jnp.float32)
    bound = 1.0 / (dim_in ** 0.5)
    weight_t = jax.random.uniform(kw, (dim_in, dim_out), jnp.float32, -bound, bound)
    bias = jax.random.uniform(kb, (dim_out,), jnp.float32, -bound, bound)

    ref = laaf_reference(x, weight_t, bias, n_scalar, a_scalar)

    out = jax.block_until_ready(laaf_layer(x, weight_t, bias, n_scalar, a_scalar))
    assert out.shape == (M, dim_out)
    assert jnp.allclose(out, ref, atol=1e-5, rtol=1e-5), "resident f32 mismatch"

    x_bf, w_bf = x.astype(jnp.bfloat16), weight_t.astype(jnp.bfloat16)
    ref_bf = laaf_reference(x_bf, w_bf, bias, n_scalar, a_scalar)
    out_bf = jax.block_until_ready(
        laaf_layer(x_bf, w_bf, bias, n_scalar, a_scalar, out_dtype=jnp.bfloat16))
    assert out_bf.dtype == jnp.bfloat16
    assert jnp.allclose(out_bf.astype(jnp.float32), ref_bf, atol=1e-2, rtol=1e-2), \
        "resident bf16 mismatch"

    # ---- Case 3/4: force the generic K-tiled streaming path -----------------
    # (small shapes; tk divides K so no K padding; ragged M exercises masking)
    M2, K2, N2 = 100, 384, 256
    x2 = jax.random.normal(kx2, (M2, K2), dtype=jnp.float32)
    bound2 = 1.0 / (K2 ** 0.5)
    w2 = jax.random.uniform(kw2, (K2, N2), jnp.float32, -bound2, bound2)
    b2 = jax.random.uniform(kb2, (N2,), jnp.float32, -bound2, bound2)
    ref2 = laaf_reference(x2, w2, b2, n_scalar, a_scalar)

    out2 = jax.block_until_ready(
        laaf_layer(x2, w2, b2, n_scalar, a_scalar,
                   tm=32, tn=128, tk=128, force_generic=True))
    assert jnp.allclose(out2, ref2, atol=1e-4, rtol=1e-4), "generic f32 mismatch"

    x2_bf, w2_bf = x2.astype(jnp.bfloat16), w2.astype(jnp.bfloat16)
    ref2_bf = laaf_reference(x2_bf, w2_bf, b2, n_scalar, a_scalar)
    out2_bf = jax.block_until_ready(
        laaf_layer(x2_bf, w2_bf, b2, n_scalar, a_scalar,
                   tm=32, tn=128, tk=128, out_dtype=jnp.bfloat16,
                   force_generic=True))
    assert jnp.allclose(out2_bf.astype(jnp.float32), ref2_bf,
                        atol=1.5e-2, rtol=1.5e-2), "generic bf16 mismatch"

    print("KERNEL_OK")
</pallas_src>

<mosaic_0001>
module attributes {stable_mosaic.version = 11 : i64} {
  func.func @_laaf_kernel_fused(%arg0: i32, %arg1: memref<136x64xf32, #tpu.memory_space<vmem>>, %arg2: memref<64x128xf32, #tpu.memory_space<vmem>>, %arg3: memref<1x128xf32, #tpu.memory_space<vmem>>, %arg4: memref<136x128xf32, #tpu.memory_space<vmem>>) attributes {dimension_semantics = [#tpu.dimension_semantics<parallel>], iteration_bounds = array<i64: 1>, scalar_prefetch = 0 : i64, scratch_operands = 0 : i64, tpu.core_type = #tpu.core_type<tc>, window_params = [{transform_indices = @transform_0, window_bounds = array<i64: 136, 64>}, {pipeline_mode = #tpu.pipeline_mode<synchronous>, transform_indices = @transform_1, window_bounds = array<i64: 64, 128>}, {pipeline_mode = #tpu.pipeline_mode<synchronous>, transform_indices = @transform_2, window_bounds = array<i64: 1, 128>}, {transform_indices = @transform_3, window_bounds = array<i64: 136, 128>}]} {
    %c0 = arith.constant 0 : index
    %c0_0 = arith.constant 0 : index
    %0 = vector.load %arg1[%c0, %c0_0] : memref<136x64xf32, #tpu.memory_space<vmem>>, vector<136x64xf32>
    %c0_1 = arith.constant 0 : index
    %c0_2 = arith.constant 0 : index
    %1 = vector.load %arg2[%c0_1, %c0_2] : memref<64x128xf32, #tpu.memory_space<vmem>>, vector<64x128xf32>
    %cst = arith.constant dense<0.000000e+00> : vector<136x128xf32>
    %2 = tpu.matmul %0, %1, %cst {dimension_numbers = #tpu.dot_dimension_numbers<[1], [0], [0], [1], [0, 0, 1, 1], [], []>} : vector<136x64xf32>, vector<64x128xf32>, vector<136x128xf32> -> vector<136x128xf32>
    %c0_3 = arith.constant 0 : index
    %c0_4 = arith.constant 0 : index
    %3 = vector.load %arg3[%c0_3, %c0_4] : memref<1x128xf32, #tpu.memory_space<vmem>>, vector<1x128xf32>
    %4 = vector.broadcast %3 : vector<1x128xf32> to vector<136x128xf32>
    %5 = arith.addf %2, %4 : vector<136x128xf32>
    %cst_5 = arith.constant 1.000000e+00 : f32
    %6 = vector.broadcast %cst_5 : f32 to vector<136x128xf32>
    %7 = arith.mulf %6, %5 : vector<136x128xf32>
    %8 = math.tanh %7 : vector<136x128xf32>
    %c0_6 = arith.constant 0 : index
    %c0_7 = arith.constant 0 : index
    %9 = vector.load %arg4[%c0_6, %c0_7] : memref<136x128xf32, #tpu.memory_space<vmem>>, vector<136x128xf32>
    tpu.vector_store %arg4[%c0_6, %c0_7], %8 {strides = array<i32>} : memref<136x128xf32, #tpu.memory_space<vmem>>, vector<136x128xf32>,
    return
  }
  func.func @transform_0(%arg0: i32) -> (i32, i32) {
    %c0_i32 = arith.constant 0 : i32
    %c0_i32_0 = arith.constant 0 : i32
    return %arg0, %c0_i32 : i32, i32
  }
  func.func @transform_1(%arg0: i32) -> (i32, i32) {
    %c0_i32 = arith.constant 0 : i32
    %c0_i32_0 = arith.constant 0 : i32
    %c0_i32_1 = arith.constant 0 : i32
    return %c0_i32, %c0_i32_0 : i32, i32
  }
  func.func @transform_2(%arg0: i32) -> (i32, i32) {
    %c0_i32 = arith.constant 0 : i32
    %c0_i32_0 = arith.constant 0 : i32
    %c0_i32_1 = arith.constant 0 : i32
    return %c0_i32, %c0_i32_0 : i32, i32
  }
  func.func @transform_3(%arg0: i32) -> (i32, i32) {
    %c0_i32 = arith.constant 0 : i32
    %c0_i32_0 = arith.constant 0 : i32
    return %arg0, %c0_i32 : i32, i32
  }
}

</mosaic_0001>

<llo_original>
// kernel: tpu_custom_call.1
$region0: #{tpu_custom_call.1}
  #allocation0 [shape = 'u32[]', space=smem, size = 0x4, offset = 0x4, fixed_abs, tag = 'smem constant byte address 0x4 - core index']
  #allocation1 [shape = 'u32[72,128]{1,0:T(1,128)}', space=vmem, size = 0x9000, scoped, tag = 'internal scratch']
  %s0 = inlined_call_operand.vmem [shape: f32[130,64], index: 0, kind: input, shape index: {}]
  %s1 = inlined_call_operand.vmem [shape: f32[64,128], index: 1, kind: input, shape index: {}]
  %s2 = inlined_call_operand.vmem [shape: f32[1,128], index: 2, kind: input, shape index: {}]
  %s3 = inlined_call_operand.hbm [shape: f32[130,128], index: 3, kind: output, shape index: {}]
  %s4 = sld [smem:[#allocation0]]
  $region22: #{tpu_custom_call.1} parent=0
    _
  %s6 = ssub.s32 1, %s4
  %s7 = scalar_select 0, %s6, %s4
  $region1: #{tpu_custom_call.1} parent=0
    #allocation2 [shape = 'u8[69632]{0}', space=vmem, size = 0x11000, scoped, tag = 'output window, operand 0, single buffered']
    #allocation3 [shape = 's32[1]{0}', space=sflag, size = 0x4, scoped, tag = 'scoped memory for tpu_custom_call.1']
    %8 = vsyncpa [#allocation3], 0
    // Predicated region
    $region2: #{tpu_custom_call.1} parent=1 // pred_check
      _
    $region3: #{tpu_custom_call.1} parent=1 // pred_check_branch
      %10 = sbr.rel (0) target = $region5
    $region4: #{tpu_custom_call.1} parent=1 // pred_region
      _
    $region5: #{tpu_custom_call.1} parent=1 // pred_fallthru
      _
    // Predicated region
    $region6: #{tpu_custom_call.1} parent=1 // pred_check
      _
    $region7: #{tpu_custom_call.1} parent=1 // pred_check_branch
      %12 = sbr.rel (0) target = $region9
    $region8: #{tpu_custom_call.1} parent=1 // pred_region
      _
    $region9: #{tpu_custom_call.1} parent=1 // pred_fallthru
      _
    // Predicated region
    $region10: #{tpu_custom_call.1} parent=1 // pred_check
      _
    $region11: #{tpu_custom_call.1} parent=1 // pred_check_branch
      %14 = sbr.rel (0) target = $region13
    $region12: #{tpu_custom_call.1} parent=1 // pred_region
      _
    $region13: #{tpu_custom_call.1} parent=1 // pred_fallthru
      _
    %v15 = vld [vmem:[%s0] sm:$0xff]
    %v16 = vld [vmem:[%s0 + $0x8] sm:$0xff]
    %v17 = vld [vmem:[%s0 + $0x10] sm:$0xff]
    %v18 = vld [vmem:[%s0 + $0x18] sm:$0xff]
    %v19 = vld [vmem:[%s0 + $0x20] sm:$0xff]
    %v20 = vld [vmem:[%s0 + $0x28] sm:$0xff]
    %v21 = vld [vmem:[%s0 + $0x30] sm:$0xff]
    %v22 = vld [vmem:[%s0 + $0x38] sm:$0xff]
    %v23 = vld [vmem:[%s0 + $0x40] sm:$0xff]
    %v24 = vld [vmem:[%s0 + $0x48] sm:$0xff]
    %v25 = vld [vmem:[%s0 + $0x50] sm:$0xff]
    %v26 = vld [vmem:[%s0 + $0x58] sm:$0xff]
    %v27 = vld [vmem:[%s0 + $0x60] sm:$0xff]
    %v28 = vld [vmem:[%s0 + $0x68] sm:$0xff]
    %v29 = vld [vmem:[%s0 + $0x70] sm:$0xff]
    %v30 = vld [vmem:[%s0 + $0x78] sm:$0xff]
    %v31 = vld [vmem:[%s0 + $0x80] sm:$0xff]
    %v32 = vld [vmem:[%s1] sm:$0xff]
    %v33 = vld [vmem:[%s1 + $0x8] sm:$0xff]
    %v34 = vld [vmem:[%s1 + $0x10] sm:$0xff]
    %v35 = vld [vmem:[%s1 + $0x18] sm:$0xff]
    %v36 = vld [vmem:[%s1 + $0x20] sm:$0xff]
    %v37 = vld [vmem:[%s1 + $0x28] sm:$0xff]
    %v38 = vld [vmem:[%s1 + $0x30] sm:$0xff]
    %v39 = vld [vmem:[%s1 + $0x38] sm:$0xff]
    %v40 = vld [vmem:[%s2] sm:$0x1]
    %v42 = vperm.slane %v40, 0
    %vm44 = vcmask 523264
    %v46 = vsel %vm44, %v15, 0
    %v49 = vsel %vm44, %v16, 0
    %v52 = vsel %vm44, %v17, 0
    %v55 = vsel %vm44, %v18, 0
    %v58 = vsel %vm44, %v19, 0
    %v61 = vsel %vm44, %v20, 0
    %v64 = vsel %vm44, %v21, 0
    %v67 = vsel %vm44, %v22, 0
    %v70 = vsel %vm44, %v23, 0
    %v73 = vsel %vm44, %v24, 0
    %v76 = vsel %vm44, %v25, 0
    %v79 = vsel %vm44, %v26, 0
    %v82 = vsel %vm44, %v27, 0
    %v85 = vsel %vm44, %v28, 0
    %v88 = vsel %vm44, %v29, 0
    %v91 = vsel %vm44, %v30, 0
    %v94 = vsel %vm44, %v31, 0
    %96 = vmatpush.msra.mxu0 0.0
    %97 = vmatpush.msra.mxu0 0.0
    %98 = vmatpush.msra.mxu0 0.0
    %99 = vmatpush.msra.mxu0 0.0
    %100 = vmatpush.msra.mxu0 0.0
    %101 = vmatpush.msra.mxu0 0.0
    %102 = vmatpush.msra.mxu0 0.0
    %103 = vmatpush.msra.mxu0 0.0
    %104 = vmatpush.msra.mxu0 %v39
    %105 = vmatpush.msra.mxu0 %v38
    %106 = vmatpush.msra.mxu0 %v37
    %107 = vmatpush.msra.mxu0 %v36
    %108 = vmatpush.msra.mxu0 %v35
    %109 = vmatpush.msra.mxu0 %v34
    %110 = vmatpush.msra.mxu0 %v33
    %111 = vmatpush.msra.mxu0 %v32
    %112 = vmatmul.f32.gmra.mxu0 %v46
    %v113 = vpop.f32.mrf.mxu0
    %v114 = vadd.f32 %v42, %v113
    %115 = vmatmul.f32.gmra.mxu0 %v49
    %v116 = vpop.f32.mrf.mxu0
    %v117 = vadd.f32 %v42, %v116
    %118 = vmatmul.f32.gmra.mxu0 %v52
    %v119 = vpop.f32.mrf.mxu0
    %v120 = vadd.f32 %v42, %v119
    %121 = vmatmul.f32.gmra.mxu0 %v55
    %v122 = vpop.f32.mrf.mxu0
    %v123 = vadd.f32 %v42, %v122
    %124 = vmatmul.f32.gmra.mxu0 %v58
    %v125 = vpop.f32.mrf.mxu0
    %v126 = vadd.f32 %v42, %v125
    %127 = vmatmul.f32.gmra.mxu0 %v61
    %v128 = vpop.f32.mrf.mxu0
    %v129 = vadd.f32 %v42, %v128
    %130 = vmatmul.f32.gmra.mxu0 %v64
    %v131 = vpop.f32.mrf.mxu0
    %v132 = vadd.f32 %v42, %v131
    %133 = vmatmul.f32.gmra.mxu0 %v67
    %v134 = vpop.f32.mrf.mxu0
    %v135 = vadd.f32 %v42, %v134
    %136 = vmatmul.f32.gmra.mxu0 %v70
    %v137 = vpop.f32.mrf.mxu0
    %v138 = vadd.f32 %v42, %v137
    %139 = vmatmul.f32.gmra.mxu0 %v73
    %v140 = vpop.f32.mrf.mxu0
    %v141 = vadd.f32 %v42, %v140
    %142 = vmatmul.f32.gmra.mxu0 %v76
    %v143 = vpop.f32.mrf.mxu0
    %v144 = vadd.f32 %v42, %v143
    %145 = vmatmul.f32.gmra.mxu0 %v79
    %v146 = vpop.f32.mrf.mxu0
    %v147 = vadd.f32 %v42, %v146
    %148 = vmatmul.f32.gmra.mxu0 %v82
    %v149 = vpop.f32.mrf.mxu0
    %v150 = vadd.f32 %v42, %v149
    %151 = vmatmul.f32.gmra.mxu0 %v85
    %v152 = vpop.f32.mrf.mxu0
    %v153 = vadd.f32 %v42, %v152
    %154 = vmatmul.f32.gmra.mxu0 %v88
    %v155 = vpop.f32.mrf.mxu0
    %v156 = vadd.f32 %v42, %v155
    %157 = vmatmul.f32.gmra.mxu0 %v91
    %v158 = vpop.f32.mrf.mxu0
    %v159 = vadd.f32 %v42, %v158
    %160 = vmatmul.f32.gmra.mxu0 %v94
    %v161 = vpop.f32.mrf.mxu0
    %v162 = vadd.f32 %v42, %v161
    %163 = vdwg.mxu0
    %v164 = vtanh.pop %v114
    %v165 = vtanh.pop %v117
    %v166 = vtanh.pop %v120
    %v167 = vtanh.pop %v123
    %v168 = vtanh.pop %v126
    %v169 = vtanh.pop %v129
    %v170 = vtanh.pop %v132
    %v171 = vtanh.pop %v135
    %v172 = vtanh.pop %v138
    %v173 = vtanh.pop %v141
    %v174 = vtanh.pop %v144
    %v175 = vtanh.pop %v147
    %v176 = vtanh.pop %v150
    %v177 = vtanh.pop %v153
    %v178 = vtanh.pop %v156
    %v179 = vtanh.pop %v159
    %v180 = vtanh.pop %v162
    %181 = vst [vmem:[#allocation2] sm:$0xff] %v164
    %182 = vst [vmem:[#allocation2 + $0x8] sm:$0xff] %v165
    %183 = vst [vmem:[#allocation2 + $0x10] sm:$0xff] %v166
    %184 = vst [vmem:[#allocation2 + $0x18] sm:$0xff] %v167
    %185 = vst [vmem:[#allocation2 + $0x20] sm:$0xff] %v168
    %186 = vst [vmem:[#allocation2 + $0x28] sm:$0xff] %v169
    %187 = vst [vmem:[#allocation2 + $0x30] sm:$0xff] %v170
    %188 = vst [vmem:[#allocation2 + $0x38] sm:$0xff] %v171
    %189 = vst [vmem:[#allocation2 + $0x40] sm:$0xff] %v172
    %190 = vst [vmem:[#allocation2 + $0x48] sm:$0xff] %v173
    %191 = vst [vmem:[#allocation2 + $0x50] sm:$0xff] %v174
    %192 = vst [vmem:[#allocation2 + $0x58] sm:$0xff] %v175
    %193 = vst [vmem:[#allocation2 + $0x60] sm:$0xff] %v176
    %194 = vst [vmem:[#allocation2 + $0x68] sm:$0xff] %v177
    %195 = vst [vmem:[#allocation2 + $0x70] sm:$0xff] %v178
    %196 = vst [vmem:[#allocation2 + $0x78] sm:$0xff] %v179
    %197 = vst [vmem:[#allocation2 + $0x80] sm:$0xff] %v180
    // Predicated region
    $region14: #{tpu_custom_call.1} parent=1 // pred_check
      _
    $region15: #{tpu_custom_call.1} parent=1 // pred_check_branch
      %199 = sbr.rel (0) target = $region17
    $region16: #{tpu_custom_call.1} parent=1 // pred_region
      %201 = vsyncadd [#allocation3], 0
      %s202 = sshll.u32 [#allocation2], 4
      %s203 = int_to_ptr.vmem [resolvable:$true] %s202
      %s204 = sshll.u32 %s3, 4
      %s205 = int_to_ptr.hbm [resolvable:$true] %s204
      %210 = dma.vmem_to_hbm [thread:$0]  %s203, 2176, %s205, [#allocation3], 128, 128, 8
    $region17: #{tpu_custom_call.1} parent=1 // pred_fallthru
      _
    // Predicated region
    $region18: #{tpu_custom_call.1} parent=1 // pred_check
      _
    $region19: #{tpu_custom_call.1} parent=1 // pred_check_branch
      %212 = sbr.rel (0) target = $region21
    $region20: #{tpu_custom_call.1} parent=1 // pred_region
      %214 = dma.done [#allocation3], 2176
    $region21: #{tpu_custom_call.1} parent=1 // pred_fallthru
      _
    %215 = vsyncpa [#allocation3], 1

</llo_original>
